<compile_context>
chip_gen: v7x
topology: tpu7x:2x2x1
jax: 0.10.0
libtpu: 0.0.40
codegen_flags: <defaults>
</compile_context>

<pallas_src>
import functools

import jax
import jax.numpy as jnp
from jax.experimental import pallas as pl
from jax.experimental.pallas import tpu as pltpu

LANES = 128
BLOCK_BYTES = 2 << 20            # ~2 MiB of input per block per stream
NEG_FILL = -30000.0              # sigmoid(NEG_FILL) == 0 in f32; finite, bf16/fp16-safe
VMEM_LIMIT_BYTES = 32 * 1024 * 1024


def _cdiv(a, b):
    return -(-a // b)


def _num_tensorcores():
    """2-way core split only pays off on 2-TensorCore chips (v7x)."""
    try:
        kind = jax.devices()[0].device_kind.lower()
    except Exception:
        return 1
    return 2 if ("v7" in kind or "7x" in kind) else 1


def _choose_tm(rows, itemsize, num_cores):
    """Rows per input block: sublane-aligned for the dtype, ~BLOCK_BYTES per block."""
    sub = 8 * max(1, 4 // itemsize)                       # native sublane tile (8/16/32)
    tm_max = max(sub, (BLOCK_BYTES // (LANES * itemsize)) // sub * sub)
    if num_cores == 1 and rows <= tm_max:
        return rows                                        # one full-extent block
    if rows <= sub:
        return rows                                        # tiny full-extent block
    per_core = _cdiv(rows, num_cores)
    return min(tm_max, _cdiv(per_core, sub) * sub)


def _dice_partials_kernel(nb, rows_in_last, x_ref, t_ref,
                          st_out, u_out, st_acc, u_acc):
    """Accumulate sigmoid(x)*t (intersection) and sigmoid(x)+t (union).

    x_ref, t_ref   : (tm, 128) input tiles (native dtype)
    st_out, u_out  : (1, 128) per-core partial-sum outputs (written once)
    st_acc, u_acc  : (tm, 128) f32 VMEM scratch accumulators (per core)
    """
    c = pl.program_id(0)              # core-split index (size 1 or 2)
    j = pl.program_id(1)              # reduction step   ("arbitrary" axis)
    bpc = pl.num_programs(1)
    g = c * bpc + j                   # global row-block index (may overflow nb)

    @pl.when(j == 0)
    def _init():
        st_acc[...] = jnp.zeros_like(st_acc)
        u_acc[...] = jnp.zeros_like(u_acc)

    tm = x_ref.shape[0]
    full_last = (rows_in_last == tm)  # static: is the last block full?

    def accumulate(row_mask=None):
        x = x_ref[...].astype(jnp.float32)
        t = t_ref[...].astype(jnp.float32)
        s = jax.nn.sigmoid(x)
        if row_mask is not None:
            s = jnp.where(row_mask, s, 0.0)
            t = jnp.where(row_mask, t, 0.0)
        st_acc[...] += s * t          # intersection partial
        u_acc[...] += s + t           # union partial

    if full_last:
        # Every in-range block is full; only skip clamped duplicate blocks.
        @pl.when(g < nb)
        def _fast():
            accumulate()
    else:
        @pl.when(g < nb - 1)
        def _fast():
            accumulate()

        @pl.when(g == nb - 1)
        def _masked_last():
            row = jax.lax.broadcasted_iota(jnp.int32, (tm, LANES), 0)
            accumulate(row < rows_in_last)

    @pl.when(j == bpc - 1)
    def _finalize():
        st_out[...] = jnp.sum(st_acc[...], axis=0, keepdims=True)
        u_out[...] = jnp.sum(u_acc[...], axis=0, keepdims=True)


def dice_loss(inputs, targets, smooth=1e-5):
    assert inputs.shape == targets.shape
    n = inputs.size

    x = inputs.reshape(-1)
    t = targets.reshape(-1)

    # Pad only the tiny (<128 element) lane tail.  The fill values make padded
    # elements contribute exactly zero, so the hot path needs no masking.
    pad = (-n) % LANES
    if pad:
        x = jnp.pad(x, (0, pad), constant_values=NEG_FILL)   # sigmoid -> 0
        t = jnp.pad(t, (0, pad), constant_values=0)
    rows = (n + pad) // LANES
    x = x.reshape(rows, LANES)
    t = t.reshape(rows, LANES)

    num_cores = _num_tensorcores()
    itemsize = x.dtype.itemsize
    tm = _choose_tm(rows, itemsize, num_cores)
    nb = _cdiv(rows, tm)              # total row-blocks
    bpc = _cdiv(nb, num_cores)        # row-blocks per core
    rows_in_last = rows - (nb - 1) * tm
    grid = (num_cores, bpc)

    def in_map(c, j):
        # Clamp overflow blocks to the last real block; the kernel skips them.
        return (jnp.minimum(c * bpc + j, nb - 1), 0)

    in_spec = pl.BlockSpec((tm, LANES), in_map)
    out_spec = pl.BlockSpec((None, 1, LANES), lambda c, j: (c, 0, 0))
    out_shape = jax.ShapeDtypeStruct((num_cores, 1, LANES), jnp.float32)

    if num_cores > 1:
        # Real 2-TC split on v7x; plain "parallel" does not change codegen.
        sem = (getattr(pltpu, "CORE_PARALLEL", "parallel"),
               getattr(pltpu, "ARBITRARY", "arbitrary"))
    else:
        sem = ("arbitrary", "arbitrary")
    # TODO(synk): if an xprof trace on v7x shows exposed DMA gaps between
    # steps, sweep pipeline_mode=pl.Buffered(3) on the two input BlockSpecs.

    st, u = pl.pallas_call(
        functools.partial(_dice_partials_kernel, nb, rows_in_last),
        out_shape=(out_shape, out_shape),
        grid=grid,
        in_specs=[in_spec, in_spec],
        out_specs=(out_spec, out_spec),
        scratch_shapes=[pltpu.VMEM((tm, LANES), jnp.float32),
                        pltpu.VMEM((tm, LANES), jnp.float32)],
        compiler_params=pltpu.CompilerParams(
            dimension_semantics=sem,
            vmem_limit_bytes=VMEM_LIMIT_BYTES),
    )(x, t)

    # Tiny final reduction (<= 2*128 values per quantity) + dice formula.
    intersection = jnp.sum(st)
    union = jnp.sum(u)
    dice = (2.0 * intersection + smooth) / (union + smooth)
    return 1.0 - dice


def dice_loss_ref(inputs, targets, smooth=1e-5):
    s = jax.nn.sigmoid(inputs.astype(jnp.float32))
    t = targets.astype(jnp.float32)
    intersection = jnp.sum(s * t)
    union = jnp.sum(s) + jnp.sum(t)
    return 1.0 - (2.0 * intersection + smooth) / (union + smooth)


if __name__ == "__main__":
    key = jax.random.PRNGKey(0)
    shapes = [
        (2, 4, 16, 16),    # NCHW, n % 128 == 0 (no tail pad), single block
        (2, 3, 7, 5),      # tiny, unaligned lane tail
        (3, 5, 37, 41),    # mid-size, single full-extent block
        (4, 1025, 130),    # > TM_MAX rows: multi-block + masked partial last block
    ]
    for i, shape in enumerate(shapes):
        k1, k2 = jax.random.split(jax.random.fold_in(key, i))
        x = jax.random.normal(k1, shape, dtype=jnp.float32)          # logits
        y = (jax.random.uniform(k2, shape) > 0.5).astype(jnp.float32)
        out = jax.block_until_ready(dice_loss(x, y))
        ref = dice_loss_ref(x, y)
        assert jnp.allclose(out, ref, atol=1e-5, rtol=1e-4), (shape, out, ref)
    print("KERNEL_OK")
</pallas_src>

<mosaic_0001>
module attributes {stable_mosaic.version = 11 : i64} {
  func.func @_dice_partials_kernel(%arg0: i32, %arg1: i32, %arg2: memref<16x128xf32, #tpu.memory_space<vmem>>, %arg3: memref<16x128xf32, #tpu.memory_space<vmem>>, %arg4: memref<1x1x128xf32, #tpu.memory_space<vmem>>, %arg5: memref<1x1x128xf32, #tpu.memory_space<vmem>>, %arg6: memref<16x128xf32, #tpu.memory_space<vmem>>, %arg7: memref<16x128xf32, #tpu.memory_space<vmem>>) attributes {dimension_semantics = [#tpu.dimension_semantics<arbitrary>, #tpu.dimension_semantics<arbitrary>], iteration_bounds = array<i64: 1, 1>, scalar_prefetch = 0 : i64, scratch_operands = 2 : i64, tpu.core_type = #tpu.core_type<tc>, window_params = [{transform_indices = @transform_0, window_bounds = array<i64: 16, 128>}, {transform_indices = @transform_1, window_bounds = array<i64: 16, 128>}, {transform_indices = @transform_2, window_bounds = array<i64: 1, 1, 128>}, {transform_indices = @transform_3, window_bounds = array<i64: 1, 1, 128>}]} {
    %c1_i32 = arith.constant 1 : i32
    %0 = arith.muli %arg0, %c1_i32 : i32
    %1 = arith.addi %0, %arg1 : i32
    %c0_i32 = arith.constant 0 : i32
    %2 = arith.cmpi eq, %arg1, %c0_i32 : i32
    %3 = arith.extui %2 : i1 to i32
    %c0_i32_0 = arith.constant 0 : i32
    %4 = arith.cmpi ne, %3, %c0_i32_0 : i32
    scf.if %4 {
      %cst = arith.constant 0.000000e+00 : f32
      %11 = vector.broadcast %cst : f32 to vector<16x128xf32>
      %c0 = arith.constant 0 : index
      %c0_5 = arith.constant 0 : index
      %12 = vector.load %arg6[%c0, %c0_5] : memref<16x128xf32, #tpu.memory_space<vmem>>, vector<16x128xf32>
      tpu.vector_store %arg6[%c0, %c0_5], %11 {strides = array<i32>} : memref<16x128xf32, #tpu.memory_space<vmem>>, vector<16x128xf32>,
      %cst_6 = arith.constant 0.000000e+00 : f32
      %13 = vector.broadcast %cst_6 : f32 to vector<16x128xf32>
      %c0_7 = arith.constant 0 : index
      %c0_8 = arith.constant 0 : index
      %14 = vector.load %arg7[%c0_7, %c0_8] : memref<16x128xf32, #tpu.memory_space<vmem>>, vector<16x128xf32>
      tpu.vector_store %arg7[%c0_7, %c0_8], %13 {strides = array<i32>} : memref<16x128xf32, #tpu.memory_space<vmem>>, vector<16x128xf32>,
    } else {
    }
    %c1_i32_1 = arith.constant 1 : i32
    %5 = arith.cmpi slt, %1, %c1_i32_1 : i32
    %6 = arith.extui %5 : i1 to i32
    %c0_i32_2 = arith.constant 0 : i32
    %7 = arith.cmpi ne, %6, %c0_i32_2 : i32
    scf.if %7 {
      %c0 = arith.constant 0 : index
      %c0_5 = arith.constant 0 : index
      %11 = vector.load %arg2[%c0, %c0_5] : memref<16x128xf32, #tpu.memory_space<vmem>>, vector<16x128xf32>
      %c0_6 = arith.constant 0 : index
      %c0_7 = arith.constant 0 : index
      %12 = vector.load %arg3[%c0_6, %c0_7] : memref<16x128xf32, #tpu.memory_space<vmem>>, vector<16x128xf32>
      %13 = arith.negf %11 : vector<16x128xf32>
      %14 = math.exp %13 : vector<16x128xf32>
      %cst = arith.constant 1.000000e+00 : f32
      %15 = vector.broadcast %cst : f32 to vector<16x128xf32>
      %16 = arith.addf %15, %14 : vector<16x128xf32>
      %17 = arith.divf %15, %16 : vector<16x128xf32>
      %c0_8 = arith.constant 0 : index
      %c0_9 = arith.constant 0 : index
      %18 = vector.load %arg6[%c0_8, %c0_9] : memref<16x128xf32, #tpu.memory_space<vmem>>, vector<16x128xf32>
      %19 = arith.mulf %17, %12 : vector<16x128xf32>
      %20 = arith.addf %18, %19 : vector<16x128xf32>
      %c0_10 = arith.constant 0 : index
      %c0_11 = arith.constant 0 : index
      %21 = vector.load %arg6[%c0_10, %c0_11] : memref<16x128xf32, #tpu.memory_space<vmem>>, vector<16x128xf32>
      tpu.vector_store %arg6[%c0_10, %c0_11], %20 {strides = array<i32>} : memref<16x128xf32, #tpu.memory_space<vmem>>, vector<16x128xf32>,
      %c0_12 = arith.constant 0 : index
      %c0_13 = arith.constant 0 : index
      %22 = vector.load %arg7[%c0_12, %c0_13] : memref<16x128xf32, #tpu.memory_space<vmem>>, vector<16x128xf32>
      %23 = arith.addf %17, %12 : vector<16x128xf32>
      %24 = arith.addf %22, %23 : vector<16x128xf32>
      %c0_14 = arith.constant 0 : index
      %c0_15 = arith.constant 0 : index
      %25 = vector.load %arg7[%c0_14, %c0_15] : memref<16x128xf32, #tpu.memory_space<vmem>>, vector<16x128xf32>
      tpu.vector_store %arg7[%c0_14, %c0_15], %24 {strides = array<i32>} : memref<16x128xf32, #tpu.memory_space<vmem>>, vector<16x128xf32>,
    } else {
    }
    %c0_i32_3 = arith.constant 0 : i32
    %8 = arith.cmpi eq, %arg1, %c0_i32_3 : i32
    %9 = arith.extui %8 : i1 to i32
    %c0_i32_4 = arith.constant 0 : i32
    %10 = arith.cmpi ne, %9, %c0_i32_4 : i32
    scf.if %10 {
      %c0 = arith.constant 0 : index
      %c0_5 = arith.constant 0 : index
      %11 = vector.load %arg6[%c0, %c0_5] : memref<16x128xf32, #tpu.memory_space<vmem>>, vector<16x128xf32>
      %cst = arith.constant dense<0.000000e+00> : vector<128xf32>
      %12 = vector.multi_reduction <add>, %11, %cst [0] : vector<16x128xf32> to vector<128xf32>
      %13 = vector.shape_cast %12 : vector<128xf32> to vector<1x128xf32>
      %c0_6 = arith.constant 0 : index
      %c0_7 = arith.constant 0 : index
      %c0_8 = arith.constant 0 : index
      %14 = vector.load %arg4[%c0_6, %c0_7, %c0_8] : memref<1x1x128xf32, #tpu.memory_space<vmem>>, vector<1x1x128xf32>
      %15 = vector.shape_cast %14 : vector<1x1x128xf32> to vector<1x128xf32>
      %16 = vector.shape_cast %13 : vector<1x128xf32> to vector<1x1x128xf32>
      tpu.vector_store %arg4[%c0_6, %c0_7, %c0_8], %16 {strides = array<i32>} : memref<1x1x128xf32, #tpu.memory_space<vmem>>, vector<1x1x128xf32>,
      %c0_9 = arith.constant 0 : index
      %c0_10 = arith.constant 0 : index
      %17 = vector.load %arg7[%c0_9, %c0_10] : memref<16x128xf32, #tpu.memory_space<vmem>>, vector<16x128xf32>
      %cst_11 = arith.constant dense<0.000000e+00> : vector<128xf32>
      %18 = vector.multi_reduction <add>, %17, %cst_11 [0] : vector<16x128xf32> to vector<128xf32>
      %19 = vector.shape_cast %18 : vector<128xf32> to vector<1x128xf32>
      %c0_12 = arith.constant 0 : index
      %c0_13 = arith.constant 0 : index
      %c0_14 = arith.constant 0 : index
      %20 = vector.load %arg5[%c0_12, %c0_13, %c0_14] : memref<1x1x128xf32, #tpu.memory_space<vmem>>, vector<1x1x128xf32>
      %21 = vector.shape_cast %20 : vector<1x1x128xf32> to vector<1x128xf32>
      %22 = vector.shape_cast %19 : vector<1x128xf32> to vector<1x1x128xf32>
      tpu.vector_store %arg5[%c0_12, %c0_13, %c0_14], %22 {strides = array<i32>} : memref<1x1x128xf32, #tpu.memory_space<vmem>>, vector<1x1x128xf32>,
    } else {
    }
    return
  }
  func.func @transform_0(%arg0: i32, %arg1: i32) -> (i32, i32) {
    %c1_i32 = arith.constant 1 : i32
    %0 = arith.muli %arg0, %c1_i32 : i32
    %1 = arith.addi %0, %arg1 : i32
    %c0_i32 = arith.constant 0 : i32
    %2 = arith.minsi %1, %c0_i32 : i32
    %c0_i32_0 = arith.constant 0 : i32
    %c0_i32_1 = arith.constant 0 : i32
    return %2, %c0_i32_0 : i32, i32
  }
  func.func @transform_1(%arg0: i32, %arg1: i32) -> (i32, i32) {
    %c1_i32 = arith.constant 1 : i32
    %0 = arith.muli %arg0, %c1_i32 : i32
    %1 = arith.addi %0, %arg1 : i32
    %c0_i32 = arith.constant 0 : i32
    %2 = arith.minsi %1, %c0_i32 : i32
    %c0_i32_0 = arith.constant 0 : i32
    %c0_i32_1 = arith.constant 0 : i32
    return %2, %c0_i32_0 : i32, i32
  }
  func.func @transform_2(%arg0: i32, %arg1: i32) -> (i32, i32, i32) {
    %c0_i32 = arith.constant 0 : i32
    %c0_i32_0 = arith.constant 0 : i32
    %c0_i32_1 = arith.constant 0 : i32
    return %arg0, %c0_i32, %c0_i32_0 : i32, i32, i32
  }
  func.func @transform_3(%arg0: i32, %arg1: i32) -> (i32, i32, i32) {
    %c0_i32 = arith.constant 0 : i32
    %c0_i32_0 = arith.constant 0 : i32
    %c0_i32_1 = arith.constant 0 : i32
    return %arg0, %c0_i32, %c0_i32_0 : i32, i32, i32
  }
}

</mosaic_0001>

<llo_original>
// kernel: tpu_custom_call.1
$region0: #{tpu_custom_call.1}
  #allocation0 [shape = 'u32[]', space=smem, size = 0x4, offset = 0x4, fixed_abs, tag = 'smem constant byte address 0x4 - core index']
  #allocation1 [shape = 'u32[144,128]{1,0:T(1,128)}', space=vmem, size = 0x12000, scoped, tag = 'internal scratch']
  #allocation2 [shape = 'f32[16,128]{1,0:T(8,128)}', space=vmem, size = 0x2000, scoped, tag = 'scratch operand']
  #allocation3 [shape = 'f32[16,128]{1,0:T(8,128)}', space=vmem, size = 0x2000, scoped, tag = 'scratch operand']
  %s0 = inlined_call_operand.hbm [shape: f32[16,128], index: 0, kind: input, shape index: {}]
  %s1 = inlined_call_operand.hbm [shape: f32[16,128], index: 1, kind: input, shape index: {}]
  %s2 = inlined_call_operand.hbm [shape: f32[1,1,128], index: 2, kind: output, shape index: {0}]
  %s3 = inlined_call_operand.hbm [shape: f32[1,1,128], index: 3, kind: output, shape index: {1}]
  %4 = xla_tuple %s2, %s3
  %s5 = sld [smem:[#allocation0]]
  $region46: #{tpu_custom_call.1} parent=0
    _
  %s7 = ssub.s32 1, %s5
  %s8 = scalar_select 0, %s7, %s5
  $region1: #{tpu_custom_call.1} parent=0
    #allocation4 [shape = 'u8[8192]{0}', space=vmem, size = 0x2000, scoped, tag = 'input window, operand 0, single buffered']
    #allocation5 [shape = 's32[1]{0}', space=sflag, size = 0x4, scoped, tag = 'scoped memory for tpu_custom_call.1']
    #allocation6 [shape = 's32[1]{0}', space=sflag, size = 0x4, scoped, tag = 'scoped memory for tpu_custom_call.1']
    #allocation7 [shape = 'u8[8192]{0}', space=vmem, size = 0x2000, scoped, tag = 'input window, operand 1, single buffered']
    #allocation8 [shape = 's32[1]{0}', space=sflag, size = 0x4, scoped, tag = 'scoped memory for tpu_custom_call.1']
    #allocation9 [shape = 'u8[512]{0}', space=vmem, size = 0x400, scoped, tag = 'output window, operand 0, single buffered']
    #allocation10 [shape = 'u8[512]{0}', space=vmem, size = 0x400, scoped, tag = 'output window, operand 1, single buffered']
    #allocation11 [shape = 's32[1]{0}', space=sflag, size = 0x4, scoped, tag = 'scoped memory for tpu_custom_call.1']
    %9 = vsyncpa [#allocation5], 0
    %10 = vsyncpa [#allocation8], 0
    %11 = vsyncpa [#allocation6], 0
    %12 = vsyncpa [#allocation11], 0
    // Predicated region
    $region2: #{tpu_custom_call.1} parent=1 // pred_check
      _
    $region3: #{tpu_custom_call.1} parent=1 // pred_check_branch
      %14 = sbr.rel (0) target = $region5
    $region4: #{tpu_custom_call.1} parent=1 // pred_region
      %s15 = sadd.s32 0, 0
      %p16 = scmp.lt.s32.totalorder %s15, 0
      %s17 = scalar_select %p16, %s15, 0
      %s18 = smul.u32 2, %s17
      %s20 = ssub.s32 256, 256
      %21 = vsyncadd [#allocation5], %s20
      %s22 = smul.addr %s18, 128
      %s23 = scalar_lea.hbm %s0, %s22
      %s24 = sshll.u32 [#allocation4], 4
      %s25 = int_to_ptr.vmem [resolvable:$true] %s24
      %30 = dma.hbm_to_vmem [thread:$0]  %s23, 256, %s25, [#allocation5], 128, 128, 8
    $region5: #{tpu_custom_call.1} parent=1 // pred_fallthru
      _
    // Predicated region
    $region6: #{tpu_custom_call.1} parent=1 // pred_check
      _
    $region7: #{tpu_custom_call.1} parent=1 // pred_check_branch
      %32 = sbr.rel (0) target = $region9
    $region8: #{tpu_custom_call.1} parent=1 // pred_region
      %s33 = sadd.s32 0, 0
      %p34 = scmp.lt.s32.totalorder %s33, 0
      %s35 = scalar_select %p34, %s33, 0
      %s36 = smul.u32 2, %s35
      %s38 = ssub.s32 256, 256
      %39 = vsyncadd [#allocation8], %s38
      %s40 = smul.addr %s36, 128
      %s41 = scalar_lea.hbm %s1, %s40
      %s42 = sshll.u32 [#allocation7], 4
      %s43 = int_to_ptr.vmem [resolvable:$true] %s42
      %48 = dma.hbm_to_vmem [thread:$0]  %s41, 256, %s43, [#allocation8], 128, 128, 8
    $region9: #{tpu_custom_call.1} parent=1 // pred_fallthru
      _
    // Predicated region
    $region10: #{tpu_custom_call.1} parent=1 // pred_check
      _
    $region11: #{tpu_custom_call.1} parent=1 // pred_check_branch
      %50 = sbr.rel (0) target = $region13
    $region12: #{tpu_custom_call.1} parent=1 // pred_region
      %51 = dma.done [#allocation5], 256
    $region13: #{tpu_custom_call.1} parent=1 // pred_fallthru
      _
    // Predicated region
    $region14: #{tpu_custom_call.1} parent=1 // pred_check
      _
    $region15: #{tpu_custom_call.1} parent=1 // pred_check_branch
      %53 = sbr.rel (0) target = $region17
    $region16: #{tpu_custom_call.1} parent=1 // pred_region
      %54 = dma.done [#allocation8], 256
    $region17: #{tpu_custom_call.1} parent=1 // pred_fallthru
      _
    %s55 = sadd.s32 0, 0
    %p56 = scmp.lt.s32.totalorder %s55, 0
    %s57 = scalar_select %p56, %s55, 0
    %s58 = smul.u32 2, %s57
    %s59 = sadd.s32 0, 0
    %p60 = scmp.lt.s32.totalorder %s59, 0
    %s61 = scalar_select %p60, %s59, 0
    %s62 = smul.u32 2, %s61
    %s63 = sadd.s32 0, 0
    %p64 = scmp.eq.s32.totalorder 0, 0
    // Predicated region
    $region18: #{tpu_custom_call.1} parent=1 // pred_check
      %p65 = pneg %p64
    $region19: #{tpu_custom_call.1} parent=1 // pred_check_branch
      %67 = sbr.rel (%p65) target = $region21
    $region20: #{tpu_custom_call.1} parent=1 // pred_region
      %68 = vst [vmem:[#allocation2] sm:$0xff] 0.0
      %69 = vst [vmem:[#allocation2 + $0x8] sm:$0xff] 0.0
      %70 = vst [vmem:[#allocation3] sm:$0xff] 0.0
      %71 = vst [vmem:[#allocation3 + $0x8] sm:$0xff] 0.0
    $region21: #{tpu_custom_call.1} parent=1 // pred_fallthru
      _
    %p72 = scmp.lt.s32.totalorder %s63, 1
    // Predicated region
    $region22: #{tpu_custom_call.1} parent=1 // pred_check
      %p73 = pneg %p72
    $region23: #{tpu_custom_call.1} parent=1 // pred_check_branch
      %75 = sbr.rel (%p73) target = $region25
    $region24: #{tpu_custom_call.1} parent=1 // pred_region
      %v76 = vld [vmem:[#allocation4] sm:$0xff]
      %v77 = vld [vmem:[#allocation4 + $0x8] sm:$0xff]
      %v78 = vld [vmem:[#allocation7] sm:$0xff]
      %v79 = vld [vmem:[#allocation7 + $0x8] sm:$0xff]
      %v80 = vxor.u32 %v76, 2147483648
      %v81 = vxor.u32 %v77, 2147483648
      %v82 = vmul.f32 %v80, 1.442695
      %v83 = vpow.pop %v82
      %v84 = vmul.f32 %v81, 1.442695
      %v85 = vpow.pop %v84
      %v86 = vadd.f32 %v83, 1.0
      %v87 = vadd.f32 %v85, 1.0
      %v88 = vrcp.pop %v86
      %v89 = vmul.f32 1.0, %v88
      %v90 = vrcp.pop %v87
      %v91 = vmul.f32 1.0, %v90
      %v92 = vld [vmem:[#allocation2] sm:$0xff]
      %v93 = vld [vmem:[#allocation2 + $0x8] sm:$0xff]
      %v94 = vmul.f32 %v89, %v78
      %v95 = vmul.f32 %v91, %v79
      %v96 = vadd.f32 %v92, %v94
      %v97 = vadd.f32 %v93, %v95
      %98 = vst [vmem:[#allocation2] sm:$0xff] %v96
      %99 = vst [vmem:[#allocation2 + $0x8] sm:$0xff] %v97
      %v100 = vld [vmem:[#allocation3] sm:$0xff]
      %v101 = vld [vmem:[#allocation3 + $0x8] sm:$0xff]
      %v102 = vadd.f32 %v89, %v78
      %v103 = vadd.f32 %v91, %v79
      %v104 = vadd.f32 %v100, %v102
      %v105 = vadd.f32 %v101, %v103
      %106 = vst [vmem:[#allocation3] sm:$0xff] %v104
      %107 = vst [vmem:[#allocation3 + $0x8] sm:$0xff] %v105
    $region25: #{tpu_custom_call.1} parent=1 // pred_fallthru
      _
    // Predicated region
    $region26: #{tpu_custom_call.1} parent=1 // pred_check
      %p108 = pneg %p64
    $region27: #{tpu_custom_call.1} parent=1 // pred_check_branch
      %110 = sbr.rel (%p108) target = $region29
    $region28: #{tpu_custom_call.1} parent=1 // pred_region
      %v111 = vld [vmem:[#allocation2] sm:$0xff]
      %v112 = vld [vmem:[#allocation2 + $0x8] sm:$0xff]
      %v113 = vadd.f32 %v111, %v112
      %v114 = vrot.slane %v113, 4
      %v115 = vadd.f32 %v113, %v114
      %v116 = vrot.slane %v115, 2
      %v117 = vadd.f32 %v115, %v116
      %v118 = vrot.slane %v117, 1
      %v119 = vadd.f32 %v117, %v118
      %120 = vst [vmem:[#allocation9] sm:$0x1] %v119
      %v121 = vld [vmem:[#allocation3] sm:$0xff]
      %v122 = vld [vmem:[#allocation3 + $0x8] sm:$0xff]
      %v123 = vadd.f32 %v121, %v122
      %v124 = vrot.slane %v123, 4
      %v125 = vadd.f32 %v123, %v124
      %v126 = vrot.slane %v125, 2
      %v127 = vadd.f32 %v125, %v126
      %v128 = vrot.slane %v127, 1
      %v129 = vadd.f32 %v127, %v128
      %130 = vst [vmem:[#allocation10] sm:$0x1] %v129
    $region29: #{tpu_custom_call.1} parent=1 // pred_fallthru
      _
    // Predicated region
    $region30: #{tpu_custom_call.1} parent=1 // pred_check
      _
    $region31: #{tpu_custom_call.1} parent=1 // pred_check_branch
      %132 = sbr.rel (0) target = $region33
    $region32: #{tpu_custom_call.1} parent=1 // pred_region
      %s134 = ssub.s32 16, 16
      %135 = vsyncadd [#allocation6], %s134
      %s137 = sshll.u32 [#allocation9], 4
      %s138 = int_to_ptr.vmem [resolvable:$true] %s137
      %140 = dma.vmem_to_hbm [thread:$0]  %s138, 16, %s2, [#allocation6]
    $region33: #{tpu_custom_call.1} parent=1 // pred_fallthru
      _
    // Predicated region
    $region34: #{tpu_custom_call.1} parent=1 // pred_check
      _
    $region35: #{tpu_custom_call.1} parent=1 // pred_check_branch
      %142 = sbr.rel (0) target = $region37
    $region36: #{tpu_custom_call.1} parent=1 // pred_region
      %s144 = ssub.s32 16, 16
      %145 = vsyncadd [#allocation11], %s144
      %s147 = sshll.u32 [#allocation10], 4
      %s148 = int_to_ptr.vmem [resolvable:$true] %s147
      %150 = dma.vmem_to_hbm [thread:$0]  %s148, 16, %s3, [#allocation11]
    $region37: #{tpu_custom_call.1} parent=1 // pred_fallthru
      _
    // Predicated region
    $region38: #{tpu_custom_call.1} parent=1 // pred_check
      _
    $region39: #{tpu_custom_call.1} parent=1 // pred_check_branch
      %152 = sbr.rel (0) target = $region41
    $region40: #{tpu_custom_call.1} parent=1 // pred_region
      %153 = dma.done [#allocation6], 16
    $region41: #{tpu_custom_call.1} parent=1 // pred_fallthru
      _
    // Predicated region
    $region42: #{tpu_custom_call.1} parent=1 // pred_check
      _
    $region43: #{tpu_custom_call.1} parent=1 // pred_check_branch
      %155 = sbr.rel (0) target = $region45
    $region44: #{tpu_custom_call.1} parent=1 // pred_region
      %156 = dma.done [#allocation11], 16
    $region45: #{tpu_custom_call.1} parent=1 // pred_fallthru
      _
    %157 = vsyncpa [#allocation5], 1
    %158 = vsyncpa [#allocation8], 1
    %159 = vsyncpa [#allocation6], 1
    %160 = vsyncpa [#allocation11], 1

</llo_original>
